<compile_context>
chip_gen: v7x
topology: tpu7x:2x2x1
jax: 0.10.0
libtpu: 0.0.40
codegen_flags: <defaults>
</compile_context>

<pallas_src>
import jax
import jax.numpy as jnp
from jax.experimental import pallas as pl
from jax.experimental.pallas import tpu as pltpu

INPUT_DIM = 2
HIDDEN_DIM = 50
OUTPUT_DIM = 3
NUM_LAYERS = 5

HIDDEN_PAD = 128   # lane-dense hidden width
OUT_PAD = 128      # lane-dense output slab width (real cols = OUTPUT_DIM)
TILE_N_MAX = 1024  # rows per grid step (multiple of 8; ~1-2 MiB live f32 per tile)


def _round_up(x, m):
    return ((x + m - 1) // m) * m


def mlp_kernel(x_ref, t_ref, w0x_ref, w0t_ref, b0_ref,
               wh_ref, bh_ref, wo_ref, bo_ref, o_ref):
    # First layer on the VPU: (TILE_N,1)*(1,128) broadcast FMAs, no K=2 MXU pass.
    h = jnp.tanh(x_ref[...] * w0x_ref[...] + t_ref[...] * w0t_ref[...] + b0_ref[...])
    # 5 hidden layers, statically unrolled (LLO can interleave MXU pushes with tanh/EUP).
    for i in range(NUM_LAYERS):
        h = jnp.tanh(
            jnp.dot(h, wh_ref[i], preferred_element_type=jnp.float32) + bh_ref[i]
        )
    # Lane-dense (TILE_N, 128) output slab; real cols [:3], rest are exactly 0.
    o_ref[...] = (
        jnp.dot(h, wo_ref[...], preferred_element_type=jnp.float32) + bo_ref[...]
    ).astype(o_ref.dtype)


def _pad_params(params):
    """Zero-pad weights to lane-dense widths; padded lanes stay 0 through tanh."""
    w0, b0, wh, bh, wo, bo = params
    f32 = jnp.float32
    w0x = jnp.zeros((1, HIDDEN_PAD), f32).at[0, :HIDDEN_DIM].set(w0[0].astype(f32))
    w0t = jnp.zeros((1, HIDDEN_PAD), f32).at[0, :HIDDEN_DIM].set(w0[1].astype(f32))
    b0p = jnp.zeros((1, HIDDEN_PAD), f32).at[:, :HIDDEN_DIM].set(b0.astype(f32))
    whp = (jnp.zeros((NUM_LAYERS, HIDDEN_PAD, HIDDEN_PAD), f32)
           .at[:, :HIDDEN_DIM, :HIDDEN_DIM].set(wh.astype(f32)))
    bhp = (jnp.zeros((NUM_LAYERS, 1, HIDDEN_PAD), f32)
           .at[:, :, :HIDDEN_DIM].set(bh.astype(f32)))
    wop = (jnp.zeros((HIDDEN_PAD, OUT_PAD), f32)
           .at[:HIDDEN_DIM, :OUTPUT_DIM].set(wo.astype(f32)))
    bop = jnp.zeros((1, OUT_PAD), f32).at[:, :OUTPUT_DIM].set(bo.astype(f32))
    return w0x, w0t, b0p, whp, bhp, wop, bop


def mlp_forward(x, t, params, *, tile_n=TILE_N_MAX):
    w0x, w0t, b0p, whp, bhp, wop, bop = _pad_params(params)

    batch_shape = x.shape
    xf = x.reshape(-1, 1).astype(jnp.float32)   # (N, 1)
    tf = t.reshape(-1, 1).astype(jnp.float32)   # (N, 1)
    n = xf.shape[0]

    tn = min(tile_n, _round_up(max(n, 1), 8))   # rows per tile, multiple of 8
    n_pad = _round_up(n, tn)
    if n_pad != n:
        pad = n_pad - n
        xf = jnp.pad(xf, ((0, pad), (0, 0)))
        tf = jnp.pad(tf, ((0, pad), (0, 0)))

    grid = (n_pad // tn,)

    row_spec = pl.BlockSpec((tn, 1), lambda i: (i, 0))

    def full_spec(shape):
        return pl.BlockSpec(shape, lambda i, _nd=len(shape): (0,) * _nd)

    flops = 2 * n_pad * (NUM_LAYERS * HIDDEN_PAD * HIDDEN_PAD + HIDDEN_PAD * OUT_PAD) \
        + 3 * n_pad * HIDDEN_PAD
    transcendentals = n_pad * HIDDEN_PAD * (NUM_LAYERS + 1)
    bytes_accessed = 4 * (
        xf.size + tf.size + n_pad * OUT_PAD
        + w0x.size + w0t.size + b0p.size + whp.size + bhp.size + wop.size + bop.size
    )

    out = pl.pallas_call(
        mlp_kernel,
        out_shape=jax.ShapeDtypeStruct((n_pad, OUT_PAD), jnp.float32),
        grid=grid,
        in_specs=[
            row_spec,                                          # x column
            row_spec,                                          # t column
            full_spec((1, HIDDEN_PAD)),                        # w0 row for x
            full_spec((1, HIDDEN_PAD)),                        # w0 row for t
            full_spec((1, HIDDEN_PAD)),                        # b0
            full_spec((NUM_LAYERS, HIDDEN_PAD, HIDDEN_PAD)),   # hidden weights (resident)
            full_spec((NUM_LAYERS, 1, HIDDEN_PAD)),            # hidden biases (resident)
            full_spec((HIDDEN_PAD, OUT_PAD)),                  # output weight
            full_spec((1, OUT_PAD)),                           # output bias
        ],
        out_specs=pl.BlockSpec((tn, OUT_PAD), lambda i: (i, 0)),
        compiler_params=pltpu.CompilerParams(
            dimension_semantics=("parallel",),
        ),
        cost_estimate=pl.CostEstimate(
            flops=int(flops),
            transcendentals=int(transcendentals),
            bytes_accessed=int(bytes_accessed),
        ),
    )(xf, tf, w0x, w0t, b0p, whp, bhp, wop, bop)

    return out[:n, :OUTPUT_DIM].reshape(*batch_shape, OUTPUT_DIM)


def init_params(key):
    """Deterministic init mimicking PyTorch Linear default (U[-1/sqrt(fan_in), +])."""
    ks = jax.random.split(key, 6)

    def lin(k, fan_in, fan_out):
        kw, kb = jax.random.split(k)
        bound = 1.0 / jnp.sqrt(jnp.float32(fan_in))
        w = jax.random.uniform(kw, (fan_in, fan_out), jnp.float32, -bound, bound)
        b = jax.random.uniform(kb, (1, fan_out), jnp.float32, -bound, bound)
        return w, b

    w0, b0 = lin(ks[0], INPUT_DIM, HIDDEN_DIM)          # (2,50), (1,50)
    wh_list, bh_list = [], []
    for i in range(NUM_LAYERS):
        w, b = lin(ks[1 + i], HIDDEN_DIM, HIDDEN_DIM)
        wh_list.append(w)
        bh_list.append(b)
    wh = jnp.stack(wh_list, axis=0)                     # (5,50,50)
    bh = jnp.stack(bh_list, axis=0)                     # (5,1,50)
    wo, bo = lin(ks[5], HIDDEN_DIM, OUTPUT_DIM)         # (50,3), (1,3)
    return w0, b0, wh, bh, wo, bo


if __name__ == "__main__":
    key = jax.random.PRNGKey(0)
    kp, kx, kt = jax.random.split(key, 3)

    params = init_params(kp)

    # small example inputs: x, t of shape (4, 8) -> output (4, 8, 3)
    x = jax.random.normal(kx, (4, 8), jnp.float32)
    t = jax.random.normal(kt, (4, 8), jnp.float32)

    out = mlp_forward(x, t, params)
    jax.block_until_ready(out)

    # pure-JAX reference for sanity (unpadded math)
    w0, b0, wh, bh, wo, bo = params
    yr = jnp.stack([x, t], axis=-1).reshape(-1, INPUT_DIM)
    hr = jnp.tanh(yr @ w0 + b0)
    for i in range(NUM_LAYERS):
        hr = jnp.tanh(hr @ wh[i] + bh[i])
    ref = (hr @ wo + bo).reshape(4, 8, OUTPUT_DIM)
    assert out.shape == ref.shape
    assert jnp.allclose(out, ref, atol=1e-5, rtol=1e-5)

    print("KERNEL_OK")
</pallas_src>

<mosaic_0001>
module attributes {stable_mosaic.version = 11 : i64} {
  func.func @mlp_kernel(%arg0: i32, %arg1: memref<32x1xf32, #tpu.memory_space<vmem>>, %arg2: memref<32x1xf32, #tpu.memory_space<vmem>>, %arg3: memref<1x128xf32, #tpu.memory_space<vmem>>, %arg4: memref<1x128xf32, #tpu.memory_space<vmem>>, %arg5: memref<1x128xf32, #tpu.memory_space<vmem>>, %arg6: memref<5x128x128xf32, #tpu.memory_space<vmem>>, %arg7: memref<5x1x128xf32, #tpu.memory_space<vmem>>, %arg8: memref<128x128xf32, #tpu.memory_space<vmem>>, %arg9: memref<1x128xf32, #tpu.memory_space<vmem>>, %arg10: memref<32x128xf32, #tpu.memory_space<vmem>>) attributes {dimension_semantics = [#tpu.dimension_semantics<parallel>], iteration_bounds = array<i64: 1>, scalar_prefetch = 0 : i64, scratch_operands = 0 : i64, tpu.core_type = #tpu.core_type<tc>, window_params = [{transform_indices = @transform_0, window_bounds = array<i64: 32, 1>}, {transform_indices = @transform_1, window_bounds = array<i64: 32, 1>}, {pipeline_mode = #tpu.pipeline_mode<synchronous>, transform_indices = @transform_2, window_bounds = array<i64: 1, 128>}, {pipeline_mode = #tpu.pipeline_mode<synchronous>, transform_indices = @transform_3, window_bounds = array<i64: 1, 128>}, {pipeline_mode = #tpu.pipeline_mode<synchronous>, transform_indices = @transform_4, window_bounds = array<i64: 1, 128>}, {pipeline_mode = #tpu.pipeline_mode<synchronous>, transform_indices = @transform_5, window_bounds = array<i64: 5, 128, 128>}, {pipeline_mode = #tpu.pipeline_mode<synchronous>, transform_indices = @transform_6, window_bounds = array<i64: 5, 1, 128>}, {pipeline_mode = #tpu.pipeline_mode<synchronous>, transform_indices = @transform_7, window_bounds = array<i64: 128, 128>}, {pipeline_mode = #tpu.pipeline_mode<synchronous>, transform_indices = @transform_8, window_bounds = array<i64: 1, 128>}, {transform_indices = @transform_9, window_bounds = array<i64: 32, 128>}]} {
    %c0 = arith.constant 0 : index
    %c0_0 = arith.constant 0 : index
    %0 = vector.load %arg1[%c0, %c0_0] : memref<32x1xf32, #tpu.memory_space<vmem>>, vector<32x1xf32>
    %c0_1 = arith.constant 0 : index
    %c0_2 = arith.constant 0 : index
    %1 = vector.load %arg3[%c0_1, %c0_2] : memref<1x128xf32, #tpu.memory_space<vmem>>, vector<1x128xf32>
    %2 = vector.broadcast %0 : vector<32x1xf32> to vector<32x128xf32>
    %3 = vector.broadcast %1 : vector<1x128xf32> to vector<32x128xf32>
    %4 = arith.mulf %2, %3 : vector<32x128xf32>
    %c0_3 = arith.constant 0 : index
    %c0_4 = arith.constant 0 : index
    %5 = vector.load %arg2[%c0_3, %c0_4] : memref<32x1xf32, #tpu.memory_space<vmem>>, vector<32x1xf32>
    %c0_5 = arith.constant 0 : index
    %c0_6 = arith.constant 0 : index
    %6 = vector.load %arg4[%c0_5, %c0_6] : memref<1x128xf32, #tpu.memory_space<vmem>>, vector<1x128xf32>
    %7 = vector.broadcast %5 : vector<32x1xf32> to vector<32x128xf32>
    %8 = vector.broadcast %6 : vector<1x128xf32> to vector<32x128xf32>
    %9 = arith.mulf %7, %8 : vector<32x128xf32>
    %10 = arith.addf %4, %9 : vector<32x128xf32>
    %c0_7 = arith.constant 0 : index
    %c0_8 = arith.constant 0 : index
    %11 = vector.load %arg5[%c0_7, %c0_8] : memref<1x128xf32, #tpu.memory_space<vmem>>, vector<1x128xf32>
    %12 = vector.broadcast %11 : vector<1x128xf32> to vector<32x128xf32>
    %13 = arith.addf %10, %12 : vector<32x128xf32>
    %14 = math.tanh %13 : vector<32x128xf32>
    %c0_9 = arith.constant 0 : index
    %c0_10 = arith.constant 0 : index
    %c0_11 = arith.constant 0 : index
    %15 = vector.load %arg6[%c0_9, %c0_10, %c0_11] : memref<5x128x128xf32, #tpu.memory_space<vmem>>, vector<1x128x128xf32>
    %16 = vector.shape_cast %15 : vector<1x128x128xf32> to vector<128x128xf32>
    %cst = arith.constant dense<0.000000e+00> : vector<32x128xf32>
    %17 = tpu.matmul %14, %16, %cst {dimension_numbers = #tpu.dot_dimension_numbers<[1], [0], [0], [1], [0, 0, 1, 1], [], []>} : vector<32x128xf32>, vector<128x128xf32>, vector<32x128xf32> -> vector<32x128xf32>
    %c0_12 = arith.constant 0 : index
    %c0_13 = arith.constant 0 : index
    %c0_14 = arith.constant 0 : index
    %18 = vector.load %arg7[%c0_12, %c0_13, %c0_14] : memref<5x1x128xf32, #tpu.memory_space<vmem>>, vector<1x1x128xf32>
    %19 = vector.shape_cast %18 : vector<1x1x128xf32> to vector<1x128xf32>
    %20 = vector.broadcast %19 : vector<1x128xf32> to vector<32x128xf32>
    %21 = arith.addf %17, %20 : vector<32x128xf32>
    %22 = math.tanh %21 : vector<32x128xf32>
    %c1 = arith.constant 1 : index
    %c0_15 = arith.constant 0 : index
    %c0_16 = arith.constant 0 : index
    %23 = vector.load %arg6[%c1, %c0_15, %c0_16] : memref<5x128x128xf32, #tpu.memory_space<vmem>>, vector<1x128x128xf32>
    %24 = vector.shape_cast %23 : vector<1x128x128xf32> to vector<128x128xf32>
    %cst_17 = arith.constant dense<0.000000e+00> : vector<32x128xf32>
    %25 = tpu.matmul %22, %24, %cst_17 {dimension_numbers = #tpu.dot_dimension_numbers<[1], [0], [0], [1], [0, 0, 1, 1], [], []>} : vector<32x128xf32>, vector<128x128xf32>, vector<32x128xf32> -> vector<32x128xf32>
    %c1_18 = arith.constant 1 : index
    %c0_19 = arith.constant 0 : index
    %c0_20 = arith.constant 0 : index
    %26 = vector.load %arg7[%c1_18, %c0_19, %c0_20] : memref<5x1x128xf32, #tpu.memory_space<vmem>>, vector<1x1x128xf32>
    %27 = vector.shape_cast %26 : vector<1x1x128xf32> to vector<1x128xf32>
    %28 = vector.broadcast %27 : vector<1x128xf32> to vector<32x128xf32>
    %29 = arith.addf %25, %28 : vector<32x128xf32>
    %30 = math.tanh %29 : vector<32x128xf32>
    %c2 = arith.constant 2 : index
    %c0_21 = arith.constant 0 : index
    %c0_22 = arith.constant 0 : index
    %31 = vector.load %arg6[%c2, %c0_21, %c0_22] : memref<5x128x128xf32, #tpu.memory_space<vmem>>, vector<1x128x128xf32>
    %32 = vector.shape_cast %31 : vector<1x128x128xf32> to vector<128x128xf32>
    %cst_23 = arith.constant dense<0.000000e+00> : vector<32x128xf32>
    %33 = tpu.matmul %30, %32, %cst_23 {dimension_numbers = #tpu.dot_dimension_numbers<[1], [0], [0], [1], [0, 0, 1, 1], [], []>} : vector<32x128xf32>, vector<128x128xf32>, vector<32x128xf32> -> vector<32x128xf32>
    %c2_24 = arith.constant 2 : index
    %c0_25 = arith.constant 0 : index
    %c0_26 = arith.constant 0 : index
    %34 = vector.load %arg7[%c2_24, %c0_25, %c0_26] : memref<5x1x128xf32, #tpu.memory_space<vmem>>, vector<1x1x128xf32>
    %35 = vector.shape_cast %34 : vector<1x1x128xf32> to vector<1x128xf32>
    %36 = vector.broadcast %35 : vector<1x128xf32> to vector<32x128xf32>
    %37 = arith.addf %33, %36 : vector<32x128xf32>
    %38 = math.tanh %37 : vector<32x128xf32>
    %c3 = arith.constant 3 : index
    %c0_27 = arith.constant 0 : index
    %c0_28 = arith.constant 0 : index
    %39 = vector.load %arg6[%c3, %c0_27, %c0_28] : memref<5x128x128xf32, #tpu.memory_space<vmem>>, vector<1x128x128xf32>
    %40 = vector.shape_cast %39 : vector<1x128x128xf32> to vector<128x128xf32>
    %cst_29 = arith.constant dense<0.000000e+00> : vector<32x128xf32>
    %41 = tpu.matmul %38, %40, %cst_29 {dimension_numbers = #tpu.dot_dimension_numbers<[1], [0], [0], [1], [0, 0, 1, 1], [], []>} : vector<32x128xf32>, vector<128x128xf32>, vector<32x128xf32> -> vector<32x128xf32>
    %c3_30 = arith.constant 3 : index
    %c0_31 = arith.constant 0 : index
    %c0_32 = arith.constant 0 : index
    %42 = vector.load %arg7[%c3_30, %c0_31, %c0_32] : memref<5x1x128xf32, #tpu.memory_space<vmem>>, vector<1x1x128xf32>
    %43 = vector.shape_cast %42 : vector<1x1x128xf32> to vector<1x128xf32>
    %44 = vector.broadcast %43 : vector<1x128xf32> to vector<32x128xf32>
    %45 = arith.addf %41, %44 : vector<32x128xf32>
    %46 = math.tanh %45 : vector<32x128xf32>
    %c4 = arith.constant 4 : index
    %c0_33 = arith.constant 0 : index
    %c0_34 = arith.constant 0 : index
    %47 = vector.load %arg6[%c4, %c0_33, %c0_34] : memref<5x128x128xf32, #tpu.memory_space<vmem>>, vector<1x128x128xf32>
    %48 = vector.shape_cast %47 : vector<1x128x128xf32> to vector<128x128xf32>
    %cst_35 = arith.constant dense<0.000000e+00> : vector<32x128xf32>
    %49 = tpu.matmul %46, %48, %cst_35 {dimension_numbers = #tpu.dot_dimension_numbers<[1], [0], [0], [1], [0, 0, 1, 1], [], []>} : vector<32x128xf32>, vector<128x128xf32>, vector<32x128xf32> -> vector<32x128xf32>
    %c4_36 = arith.constant 4 : index
    %c0_37 = arith.constant 0 : index
    %c0_38 = arith.constant 0 : index
    %50 = vector.load %arg7[%c4_36, %c0_37, %c0_38] : memref<5x1x128xf32, #tpu.memory_space<vmem>>, vector<1x1x128xf32>
    %51 = vector.shape_cast %50 : vector<1x1x128xf32> to vector<1x128xf32>
    %52 = vector.broadcast %51 : vector<1x128xf32> to vector<32x128xf32>
    %53 = arith.addf %49, %52 : vector<32x128xf32>
    %54 = math.tanh %53 : vector<32x128xf32>
    %c0_39 = arith.constant 0 : index
    %c0_40 = arith.constant 0 : index
    %55 = vector.load %arg8[%c0_39, %c0_40] : memref<128x128xf32, #tpu.memory_space<vmem>>, vector<128x128xf32>
    %cst_41 = arith.constant dense<0.000000e+00> : vector<32x128xf32>
    %56 = tpu.matmul %54, %55, %cst_41 {dimension_numbers = #tpu.dot_dimension_numbers<[1], [0], [0], [1], [0, 0, 1, 1], [], []>} : vector<32x128xf32>, vector<128x128xf32>, vector<32x128xf32> -> vector<32x128xf32>
    %c0_42 = arith.constant 0 : index
    %c0_43 = arith.constant 0 : index
    %57 = vector.load %arg9[%c0_42, %c0_43] : memref<1x128xf32, #tpu.memory_space<vmem>>, vector<1x128xf32>
    %58 = vector.broadcast %57 : vector<1x128xf32> to vector<32x128xf32>
    %59 = arith.addf %56, %58 : vector<32x128xf32>
    %c0_44 = arith.constant 0 : index
    %c0_45 = arith.constant 0 : index
    %60 = vector.load %arg10[%c0_44, %c0_45] : memref<32x128xf32, #tpu.memory_space<vmem>>, vector<32x128xf32>
    tpu.vector_store %arg10[%c0_44, %c0_45], %59 {strides = array<i32>} : memref<32x128xf32, #tpu.memory_space<vmem>>, vector<32x128xf32>,
    return
  }
  func.func @transform_0(%arg0: i32) -> (i32, i32) {
    %c0_i32 = arith.constant 0 : i32
    %c0_i32_0 = arith.constant 0 : i32
    return %arg0, %c0_i32 : i32, i32
  }
  func.func @transform_1(%arg0: i32) -> (i32, i32) {
    %c0_i32 = arith.constant 0 : i32
    %c0_i32_0 = arith.constant 0 : i32
    return %arg0, %c0_i32 : i32, i32
  }
  func.func @transform_2(%arg0: i32) -> (i32, i32) {
    %c0_i32 = arith.constant 0 : i32
    %c0_i32_0 = arith.constant 0 : i32
    %c0_i32_1 = arith.constant 0 : i32
    return %c0_i32, %c0_i32_0 : i32, i32
  }
  func.func @transform_3(%arg0: i32) -> (i32, i32) {
    %c0_i32 = arith.constant 0 : i32
    %c0_i32_0 = arith.constant 0 : i32
    %c0_i32_1 = arith.constant 0 : i32
    return %c0_i32, %c0_i32_0 : i32, i32
  }
  func.func @transform_4(%arg0: i32) -> (i32, i32) {
    %c0_i32 = arith.constant 0 : i32
    %c0_i32_0 = arith.constant 0 : i32
    %c0_i32_1 = arith.constant 0 : i32
    return %c0_i32, %c0_i32_0 : i32, i32
  }
  func.func @transform_5(%arg0: i32) -> (i32, i32, i32) {
    %c0_i32 = arith.constant 0 : i32
    %c0_i32_0 = arith.constant 0 : i32
    %c0_i32_1 = arith.constant 0 : i32
    %c0_i32_2 = arith.constant 0 : i32
    return %c0_i32, %c0_i32_0, %c0_i32_1 : i32, i32, i32
  }
  func.func @transform_6(%arg0: i32) -> (i32, i32, i32) {
    %c0_i32 = arith.constant 0 : i32
    %c0_i32_0 = arith.constant 0 : i32
    %c0_i32_1 = arith.constant 0 : i32
    %c0_i32_2 = arith.constant 0 : i32
    return %c0_i32, %c0_i32_0, %c0_i32_1 : i32, i32, i32
  }
  func.func @transform_7(%arg0: i32) -> (i32, i32) {
    %c0_i32 = arith.constant 0 : i32
    %c0_i32_0 = arith.constant 0 : i32
    %c0_i32_1 = arith.constant 0 : i32
    return %c0_i32, %c0_i32_0 : i32, i32
  }
  func.func @transform_8(%arg0: i32) -> (i32, i32) {
    %c0_i32 = arith.constant 0 : i32
    %c0_i32_0 = arith.constant 0 : i32
    %c0_i32_1 = arith.constant 0 : i32
    return %c0_i32, %c0_i32_0 : i32, i32
  }
  func.func @transform_9(%arg0: i32) -> (i32, i32) {
    %c0_i32 = arith.constant 0 : i32
    %c0_i32_0 = arith.constant 0 : i32
    return %arg0, %c0_i32 : i32, i32
  }
}

</mosaic_0001>

<llo_original>
// kernel: tpu_custom_call.1
$region0: #{tpu_custom_call.1}
  #allocation0 [shape = 'u32[]', space=smem, size = 0x4, offset = 0x4, fixed_abs, tag = 'smem constant byte address 0x4 - core index']
  #allocation1 [shape = 'u32[144,128]{1,0:T(1,128)}', space=vmem, size = 0x12000, scoped, tag = 'internal scratch']
  %s0 = inlined_call_operand.vmem [shape: f32[32,1], index: 0, kind: input, shape index: {}]
  %s1 = inlined_call_operand.vmem [shape: f32[32,1], index: 1, kind: input, shape index: {}]
  %s2 = inlined_call_operand.vmem [shape: f32[1,128], index: 2, kind: input, shape index: {}]
  %s3 = inlined_call_operand.vmem [shape: f32[1,128], index: 3, kind: input, shape index: {}]
  %s4 = inlined_call_operand.vmem [shape: f32[1,128], index: 4, kind: input, shape index: {}]
  %s5 = inlined_call_operand.hbm [shape: f32[5,128,128], index: 5, kind: input, shape index: {}]
  %s6 = inlined_call_operand.vmem [shape: f32[5,1,128], index: 6, kind: input, shape index: {}]
  %s7 = inlined_call_operand.hbm [shape: f32[128,128], index: 7, kind: input, shape index: {}]
  %s8 = inlined_call_operand.vmem [shape: f32[1,128], index: 8, kind: input, shape index: {}]
  %s9 = inlined_call_operand.hbm [shape: f32[32,128], index: 9, kind: output, shape index: {}]
  %s10 = sld [smem:[#allocation0]]
  $region54: #{tpu_custom_call.1} parent=0
    _
  %s12 = ssub.s32 1, %s10
  %s13 = scalar_select 0, %s12, %s10
  $region1: #{tpu_custom_call.1} parent=0
    #allocation2 [shape = 'u8[327680]{0}', space=vmem, size = 0x50000, scoped, tag = 'input window, operand 5, single buffered']
    #allocation3 [shape = 's32[1]{0}', space=sflag, size = 0x4, scoped, tag = 'scoped memory for tpu_custom_call.1']
    #allocation4 [shape = 's32[1]{0}', space=sflag, size = 0x4, scoped, tag = 'scoped memory for tpu_custom_call.1']
    #allocation5 [shape = 'u8[65536]{0}', space=vmem, size = 0x10000, scoped, tag = 'input window, operand 7, single buffered']
    #allocation6 [shape = 's32[1]{0}', space=sflag, size = 0x4, scoped, tag = 'scoped memory for tpu_custom_call.1']
    #allocation7 [shape = 'u8[16384]{0}', space=vmem, size = 0x4000, scoped, tag = 'output window, operand 0, single buffered']
    %14 = vsyncpa [#allocation3], 0
    %15 = vsyncpa [#allocation6], 0
    %16 = vsyncpa [#allocation4], 0
    // Predicated region
    $region2: #{tpu_custom_call.1} parent=1 // pred_check
      _
    $region3: #{tpu_custom_call.1} parent=1 // pred_check_branch
      %18 = sbr.rel (0) target = $region5
    $region4: #{tpu_custom_call.1} parent=1 // pred_region
      _
    $region5: #{tpu_custom_call.1} parent=1 // pred_fallthru
      _
    // Predicated region
    $region6: #{tpu_custom_call.1} parent=1 // pred_check
      _
    $region7: #{tpu_custom_call.1} parent=1 // pred_check_branch
      %20 = sbr.rel (0) target = $region9
    $region8: #{tpu_custom_call.1} parent=1 // pred_region
      _
    $region9: #{tpu_custom_call.1} parent=1 // pred_fallthru
      _
    // Predicated region
    $region10: #{tpu_custom_call.1} parent=1 // pred_check
      _
    $region11: #{tpu_custom_call.1} parent=1 // pred_check_branch
      %22 = sbr.rel (0) target = $region13
    $region12: #{tpu_custom_call.1} parent=1 // pred_region
      _
    $region13: #{tpu_custom_call.1} parent=1 // pred_fallthru
      _
    // Predicated region
    $region14: #{tpu_custom_call.1} parent=1 // pred_check
      _
    $region15: #{tpu_custom_call.1} parent=1 // pred_check_branch
      %24 = sbr.rel (0) target = $region17
    $region16: #{tpu_custom_call.1} parent=1 // pred_region
      _
    $region17: #{tpu_custom_call.1} parent=1 // pred_fallthru
      _
    // Predicated region
    $region18: #{tpu_custom_call.1} parent=1 // pred_check
      _
    $region19: #{tpu_custom_call.1} parent=1 // pred_check_branch
      %26 = sbr.rel (0) target = $region21
    $region20: #{tpu_custom_call.1} parent=1 // pred_region
      _
    $region21: #{tpu_custom_call.1} parent=1 // pred_fallthru
      _
    // Predicated region
    $region22: #{tpu_custom_call.1} parent=1 // pred_check
      _
    $region23: #{tpu_custom_call.1} parent=1 // pred_check_branch
      %28 = sbr.rel (0) target = $region25
    $region24: #{tpu_custom_call.1} parent=1 // pred_region
      %s30 = ssub.s32 10240, 10240
      %31 = vsyncadd [#allocation3], %s30
      %s32 = sshll.u32 [#allocation2], 4
      %s33 = int_to_ptr.vmem [resolvable:$true] %s32
      %38 = dma.hbm_to_vmem [thread:$0]  %s5, 10240, %s33, [#allocation3], 128, 128, 8
    $region25: #{tpu_custom_call.1} parent=1 // pred_fallthru
      _
    // Predicated region
    $region26: #{tpu_custom_call.1} parent=1 // pred_check
      _
    $region27: #{tpu_custom_call.1} parent=1 // pred_check_branch
      %40 = sbr.rel (0) target = $region29
    $region28: #{tpu_custom_call.1} parent=1 // pred_region
      _
    $region29: #{tpu_custom_call.1} parent=1 // pred_fallthru
      _
    // Predicated region
    $region30: #{tpu_custom_call.1} parent=1 // pred_check
      _
    $region31: #{tpu_custom_call.1} parent=1 // pred_check_branch
      %42 = sbr.rel (0) target = $region33
    $region32: #{tpu_custom_call.1} parent=1 // pred_region
      %s44 = ssub.s32 2048, 2048
      %45 = vsyncadd [#allocation6], %s44
      %s46 = sshll.u32 [#allocation5], 4
      %s47 = int_to_ptr.vmem [resolvable:$true] %s46
      %52 = dma.hbm_to_vmem [thread:$0]  %s7, 2048, %s47, [#allocation6], 128, 128, 8
    $region33: #{tpu_custom_call.1} parent=1 // pred_fallthru
      _
    // Predicated region
    $region34: #{tpu_custom_call.1} parent=1 // pred_check
      _
    $region35: #{tpu_custom_call.1} parent=1 // pred_check_branch
      %54 = sbr.rel (0) target = $region37
    $region36: #{tpu_custom_call.1} parent=1 // pred_region
      _
    $region37: #{tpu_custom_call.1} parent=1 // pred_fallthru
      _
    // Predicated region
    $region38: #{tpu_custom_call.1} parent=1 // pred_check
      _
    $region39: #{tpu_custom_call.1} parent=1 // pred_check_branch
      %56 = sbr.rel (0) target = $region41
    $region40: #{tpu_custom_call.1} parent=1 // pred_region
      %57 = dma.done [#allocation3], 10240
    $region41: #{tpu_custom_call.1} parent=1 // pred_fallthru
      _
    // Predicated region
    $region42: #{tpu_custom_call.1} parent=1 // pred_check
      _
    $region43: #{tpu_custom_call.1} parent=1 // pred_check_branch
      %59 = sbr.rel (0) target = $region45
    $region44: #{tpu_custom_call.1} parent=1 // pred_region
      %60 = dma.done [#allocation6], 2048
    $region45: #{tpu_custom_call.1} parent=1 // pred_fallthru
      _
    %v61 = vld [vmem:[%s0] sm:$0xff]
    %v62 = vld [vmem:[%s0 + $0x8] sm:$0xff]
    %v63 = vld [vmem:[%s0 + $0x10] sm:$0xff]
    %v64 = vld [vmem:[%s0 + $0x18] sm:$0xff]
    %v65 = vld [vmem:[%s2] sm:$0x1]
    %67 = vset.pattern.permute.xlu0 0
    %68 = vperm.xlu0 %67, %v61
    %v69 = vpop.permute.xlu0 %68
    %72 = vset.pattern.permute.xlu0 0
    %73 = vperm.xlu0 %72, %v62
    %v74 = vpop.permute.xlu0 %73
    %77 = vset.pattern.permute.xlu0 0
    %78 = vperm.xlu0 %77, %v63
    %v79 = vpop.permute.xlu0 %78
    %82 = vset.pattern.permute.xlu0 0
    %83 = vperm.xlu0 %82, %v64
    %v84 = vpop.permute.xlu0 %83
    %v87 = vlaneseq
    %v88 = vshrl.u32 %v87, 7
    %v89 = vsub.s32 0, %v88
    %v90 = vrot.slane %v65, %v89
    %v92 = vmul.f32 %v69, %v90
    %v93 = vmul.f32 %v74, %v90
    %v94 = vmul.f32 %v79, %v90
    %v95 = vmul.f32 %v84, %v90
    %v96 = vld [vmem:[%s1] sm:$0xff]
    %v97 = vld [vmem:[%s1 + $0x8] sm:$0xff]
    %v98 = vld [vmem:[%s1 + $0x10] sm:$0xff]
    %v99 = vld [vmem:[%s1 + $0x18] sm:$0xff]
    %v100 = vld [vmem:[%s3] sm:$0x1]
    %102 = vset.pattern.permute.xlu0 0
    %103 = vperm.xlu0 %102, %v96
    %v104 = vpop.permute.xlu0 %103
    %107 = vset.pattern.permute.xlu0 0
    %108 = vperm.xlu0 %107, %v97
    %v109 = vpop.permute.xlu0 %108
    %112 = vset.pattern.permute.xlu0 0
    %113 = vperm.xlu0 %112, %v98
    %v114 = vpop.permute.xlu0 %113
    %117 = vset.pattern.permute.xlu0 0
    %118 = vperm.xlu0 %117, %v99
    %v119 = vpop.permute.xlu0 %118
    %v122 = vlaneseq
    %v123 = vshrl.u32 %v122, 7
    %v124 = vsub.s32 0, %v123
    %v125 = vrot.slane %v100, %v124
    %v127 = vmul.f32 %v104, %v125
    %v128 = vmul.f32 %v109, %v125
    %v129 = vmul.f32 %v114, %v125
    %v130 = vmul.f32 %v119, %v125
    %v131 = vadd.f32 %v92, %v127
    %v132 = vadd.f32 %v93, %v128
    %v133 = vadd.f32 %v94, %v129
    %v134 = vadd.f32 %v95, %v130
    %v135 = vld [vmem:[%s4] sm:$0x1]
    %v137 = vlaneseq
    %v138 = vshrl.u32 %v137, 7
    %v139 = vsub.s32 0, %v138
    %v140 = vrot.slane %v135, %v139
    %v142 = vadd.f32 %v131, %v140
    %v143 = vadd.f32 %v132, %v140
    %v144 = vadd.f32 %v133, %v140
    %v145 = vadd.f32 %v134, %v140
    %v146 = vtanh.pop %v142
    %v147 = vtanh.pop %v143
    %v148 = vtanh.pop %v144
    %v149 = vtanh.pop %v145
    %v150 = vld [vmem:[#allocation2] sm:$0xff]
    %v151 = vld [vmem:[#allocation2 + $0x8] sm:$0xff]
    %v152 = vld [vmem:[#allocation2 + $0x10] sm:$0xff]
    %v153 = vld [vmem:[#allocation2 + $0x18] sm:$0xff]
    %v154 = vld [vmem:[#allocation2 + $0x20] sm:$0xff]
    %v155 = vld [vmem:[#allocation2 + $0x28] sm:$0xff]
    %v156 = vld [vmem:[#allocation2 + $0x30] sm:$0xff]
    %v157 = vld [vmem:[#allocation2 + $0x38] sm:$0xff]
    %v158 = vld [vmem:[#allocation2 + $0x40] sm:$0xff]
    %v159 = vld [vmem:[#allocation2 + $0x48] sm:$0xff]
    %v160 = vld [vmem:[#allocation2 + $0x50] sm:$0xff]
    %v161 = vld [vmem:[#allocation2 + $0x58] sm:$0xff]
    %v162 = vld [vmem:[#allocation2 + $0x60] sm:$0xff]
    %v163 = vld [vmem:[#allocation2 + $0x68] sm:$0xff]
    %v164 = vld [vmem:[#allocation2 + $0x70] sm:$0xff]
    %v165 = vld [vmem:[#allocation2 + $0x78] sm:$0xff]
    %v166 = vld [vmem:[%s6] sm:$0x1]
    %v168 = vlaneseq
    %v169 = vshrl.u32 %v168, 7
    %v170 = vsub.s32 0, %v169
    %v171 = vrot.slane %v166, %v170
    %173 = vmatprep.subr.mxu0 0.0
    %174 = vmatpush1.msra.mxu0 %v150
    %175 = vmatprep.subr.mxu0 0.0
    %176 = vmatpush1.msra.mxu0 %v151
    %177 = vmatprep.subr.mxu0 0.0
    %178 = vmatpush1.msra.mxu0 %v152
    %179 = vmatprep.subr.mxu0 0.0
    %180 = vmatpush1.msra.mxu0 %v153
    %181 = vmatprep.subr.mxu0 0.0
    %182 = vmatpush1.msra.mxu0 %v154
    %183 = vmatprep.subr.mxu0 0.0
    %184 = vmatpush1.msra.mxu0 %v155
    %185 = vmatprep.subr.mxu0 0.0
    %186 = vmatpush1.msra.mxu0 %v156
    %187 = vmatprep.subr.mxu0 0.0
    %188 = vmatpush1.msra.mxu0 %v157
    %189 = vmatprep.subr.mxu0 0.0
    %190 = vmatpush1.msra.mxu0 %v158
    %191 = vmatprep.subr.mxu0 0.0
    %192 = vmatpush1.msra.mxu0 %v159
    %193 = vmatprep.subr.mxu0 0.0
    %194 = vmatpush1.msra.mxu0 %v160
    %195 = vmatprep.subr.mxu0 0.0
    %196 = vmatpush1.msra.mxu0 %v161
    %197 = vmatprep.subr.mxu0 0.0
    %198 = vmatpush1.msra.mxu0 %v162
    %199 = vmatprep.subr.mxu0 0.0
    %200 = vmatpush1.msra.mxu0 %v163
    %201 = vmatprep.subr.mxu0 0.0
    %202 = vmatpush1.msra.mxu0 %v164
    %203 = vmatprep.subr.mxu0 0.0
    %204 = vmatpush1.msra.mxu0 %v165
    %205 = vmatprep.subr.mxu0 0.0
    %206 = vmatpush1.msra.mxu0 0.0
    %207 = vmatprep.subr.mxu0 0.0
    %208 = vmatpush1.msra.mxu0 0.0
    %209 = vmatprep.subr.mxu0 0.0
    %210 = vmatpush1.msra.mxu0 0.0
    %211 = vmatprep.subr.mxu0 0.0
    %212 = vmatpush1.msra.mxu0 0.0
    %213 = vmatprep.subr.mxu0 0.0
    %214 = vmatpush1.msra.mxu0 0.0
    %215 = vmatprep.subr.mxu0 0.0
    %216 = vmatpush1.msra.mxu0 0.0
    %217 = vmatprep.subr.mxu0 0.0
    %218 = vmatpush1.msra.mxu0 0.0
    %219 = vmatprep.subr.mxu0 0.0
    %220 = vmatpush1.msra.mxu0 0.0
    %221 = vmatprep.subr.mxu0 0.0
    %222 = vmatpush1.msra.mxu0 0.0
    %223 = vmatprep.subr.mxu0 0.0
    %224 = vmatpush1.msra.mxu0 0.0
    %225 = vmatprep.subr.mxu0 0.0
    %226 = vmatpush1.msra.mxu0 0.0
    %227 = vmatprep.subr.mxu0 0.0
    %228 = vmatpush1.msra.mxu0 0.0
    %229 = vmatprep.subr.mxu0 0.0
    %230 = vmatpush1.msra.mxu0 0.0
    %231 = vmatprep.subr.mxu0 0.0
    %232 = vmatpush1.msra.mxu0 0.0
    %233 = vmatprep.subr.mxu0 0.0
    %234 = vmatpush1.msra.mxu0 0.0
    %235 = vmatprep.subr.mxu0 0.0
    %236 = vmatpush1.msra.mxu0 0.0
    %237 = vmatprep.mubr.f32.mxu0 0.0
    %238 = vmatmul.mubr.f32.gmra.mrb[0].mxu0 %v146
    %v239 = vpop.f32.mrb[0].mxu0
    %v240 = vadd.f32 %v171, %v239
    %v241 = vpop.f32.mrb[0].mxu0
    %242 = vmatprep.mubr.f32.mxu0 0.0
    %243 = vmatmul.mubr.f32.gmra.mrb[0].mxu0 %v147
    %v244 = vpop.f32.mrb[0].mxu0
    %v245 = vadd.f32 %v171, %v244
    %v246 = vpop.f32.mrb[0].mxu0
    %247 = vmatprep.mubr.f32.mxu0 0.0
    %248 = vmatmul.mubr.f32.gmra.mrb[0].mxu0 %v148
    %v249 = vpop.f32.mrb[0].mxu0
    %v250 = vadd.f32 %v171, %v249
    %v251 = vpop.f32.mrb[0].mxu0
    %252 = vmatprep.mubr.f32.mxu0 0.0
    %253 = vmatmul.mubr.f32.gmra.mrb[0].mxu0 %v149
    %v254 = vpop.f32.mrb[0].mxu0
    %v255 = vadd.f32 %v171, %v254
    %v256 = vpop.f32.mrb[0].mxu0
    %257 = vdwg.mxu0
    %v258 = vtanh.pop %v240
    %v259 = vtanh.pop %v245
    %v260 = vtanh.pop %v250
    %v261 = vtanh.pop %v255
    %s262 = scalar_lea.vmem [#allocation2], 128
    %v263 = vld [vmem:[%s262] sm:$0xff]
    %v264 = vld [vmem:[%s262 + $0x8] sm:$0xff]
    %v265 = vld [vmem:[%s262 + $0x10] sm:$0xff]
    %v266 = vld [vmem:[%s262 + $0x18] sm:$0xff]
    %v267 = vld [vmem:[%s262 + $0x20] sm:$0xff]
    %v268 = vld [vmem:[%s262 + $0x28] sm:$0xff]
    %v269 = vld [vmem:[%s262 + $0x30] sm:$0xff]
    %v270 = vld [vmem:[%s262 + $0x38] sm:$0xff]
    %v271 = vld [vmem:[%s262 + $0x40] sm:$0xff]
    %v272 = vld [vmem:[%s262 + $0x48] sm:$0xff]
    %v273 = vld [vmem:[%s262 + $0x50] sm:$0xff]
    %v274 = vld [vmem:[%s262 + $0x58] sm:$0xff]
    %v275 = vld [vmem:[%s262 + $0x60] sm:$0xff]
    %v276 = vld [vmem:[%s262 + $0x68] sm:$0xff]
    %v277 = vld [vmem:[%s262 + $0x70] sm:$0xff]
    %v278 = vld [vmem:[%s262 + $0x78] sm:$0xff]
    %s279 = scalar_lea.vmem %s6, 1
    %v280 = vld [vmem:[%s279] sm:$0x1]
    %v282 = vlaneseq
    %v283 = vshrl.u32 %v282, 7
    %v284 = vsub.s32 0, %v283
    %v285 = vrot.slane %v280, %v284
    %287 = vmatprep.subr.mxu0 0.0
    %288 = vmatpush1.msra.mxu0 %v263
    %289 = vmatprep.subr.mxu0 0.0
    %290 = vmatpush1.msra.mxu0 %v264
    %291 = vmatprep.subr.mxu0 0.0
    %292 = vmatpush1.msra.mxu0 %v265
    %293 = vmatprep.subr.mxu0 0.0
    %294 = vmatpush1.msra.mxu0 %v266
    %295 = vmatprep.subr.mxu0 0.0
    %296 = vmatpush1.msra.mxu0 %v267
    %297 = vmatprep.subr.mxu0 0.0
    %298 = vmatpush1.msra.mxu0 %v268
    %299 = vmatprep.subr.mxu0 0.0
    %300 = vmatpush1.msra.mxu0 %v269
    %301 = vmatprep.subr.mxu0 0.0
    %302 = vmatpush1.msra.mxu0 %v270
    %303 = vmatprep.subr.mxu0 0.0
    %304 = vmatpush1.msra.mxu0 %v271
    %305 = vmatprep.subr.mxu0 0.0
    %306 = vmatpush1.msra.mxu0 %v272
    %307 = vmatprep.subr.mxu0 0.0
    %308 = vmatpush1.msra.mxu0 %v273
    %309 = vmatprep.subr.mxu0 0.0
    %310 = vmatpush1.msra.mxu0 %v274
    %311 = vmatprep.subr.mxu0 0.0
    %312 = vmatpush1.msra.mxu0 %v275
    %313 = vmatprep.subr.mxu0 0.0
    %314 = vmatpush1.msra.mxu0 %v276
    %315 = vmatprep.subr.mxu0 0.0
    %316 = vmatpush1.msra.mxu0 %v277
    %317 = vmatprep.subr.mxu0 0.0
    %318 = vmatpush1.msra.mxu0 %v278
    %319 = vmatprep.subr.mxu0 0.0
    %320 = vmatpush1.msra.mxu0 0.0
    %321 = vmatprep.subr.mxu0 0.0
    %322 = vmatpush1.msra.mxu0 0.0
    %323 = vmatprep.subr.mxu0 0.0
    %324 = vmatpush1.msra.mxu0 0.0
    %325 = vmatprep.subr.mxu0 0.0
    %326 = vmatpush1.msra.mxu0 0.0
    %327 = vmatprep.subr.mxu0 0.0
    %328 = vmatpush1.msra.mxu0 0.0
    %329 = vmatprep.subr.mxu0 0.0
    %330 = vmatpush1.msra.mxu0 0.0
    %331 = vmatprep.subr.mxu0 0.0
    %332 = vmatpush1.msra.mxu0 0.0
    %333 = vmatprep.subr.mxu0 0.0
    %334 = vmatpush1.msra.mxu0 0.0
    %335 = vmatprep.subr.mxu0 0.0
    %336 = vmatpush1.msra.mxu0 0.0
    %337 = vmatprep.subr.mxu0 0.0
    %338 = vmatpush1.msra.mxu0 0.0
    %339 = vmatprep.subr.mxu0 0.0
    %340 = vmatpush1.msra.mxu0 0.0
    %341 = vmatprep.subr.mxu0 0.0
    %342 = vmatpush1.msra.mxu0 0.0
    %343 = vmatprep.subr.mxu0 0.0
    %344 = vmatpush1.msra.mxu0 0.0
    %345 = vmatprep.subr.mxu0 0.0
    %346 = vmatpush1.msra.mxu0 0.0
    %347 = vmatprep.subr.mxu0 0.0
    %348 = vmatpush1.msra.mxu0 0.0
    %349 = vmatprep.subr.mxu0 0.0
    %350 = vmatpush1.msra.mxu0 0.0
    %351 = vmatprep.mubr.f32.mxu0 0.0
    %352 = vmatmul.mubr.f32.gmra.mrb[0].mxu0 %v258
    %v353 = vpop.f32.mrb[0].mxu0
    %v354 = vadd.f32 %v285, %v353
    %v355 = vpop.f32.mrb[0].mxu0
    %356 = vmatprep.mubr.f32.mxu0 0.0
    %357 = vmatmul.mubr.f32.gmra.mrb[0].mxu0 %v259
    %v358 = vpop.f32.mrb[0].mxu0
    %v359 = vadd.f32 %v285, %v358
    %v360 = vpop.f32.mrb[0].mxu0
    %361 = vmatprep.mubr.f32.mxu0 0.0
    %362 = vmatmul.mubr.f32.gmra.mrb[0].mxu0 %v260
    %v363 = vpop.f32.mrb[0].mxu0
    %v364 = vadd.f32 %v285, %v363
    %v365 = vpop.f32.mrb[0].mxu0
    %366 = vmatprep.mubr.f32.mxu0 0.0
    %367 = vmatmul.mubr.f32.gmra.mrb[0].mxu0 %v261
    %v368 = vpop.f32.mrb[0].mxu0
    %v369 = vadd.f32 %v285, %v368
    %v370 = vpop.f32.mrb[0].mxu0
    %371 = vdwg.mxu0
    %v372 = vtanh.pop %v354
    %v373 = vtanh.pop %v359
    %v374 = vtanh.pop %v364
    %v375 = vtanh.pop %v369
    %s376 = scalar_lea.vmem [#allocation2], 256
    %v377 = vld [vmem:[%s376] sm:$0xff]
    %v378 = vld [vmem:[%s376 + $0x8] sm:$0xff]
    %v379 = vld [vmem:[%s376 + $0x10] sm:$0xff]
    %v380 = vld [vmem:[%s376 + $0x18] sm:$0xff]
    %v381 = vld [vmem:[%s376 + $0x20] sm:$0xff]
    %v382 = vld [vmem:[%s376 + $0x28] sm:$0xff]
    %v383 = vld [vmem:[%s376 + $0x30] sm:$0xff]
    %v384 = vld [vmem:[%s376 + $0x38] sm:$0xff]
    %v385 = vld [vmem:[%s376 + $0x40] sm:$0xff]
    %v386 = vld [vmem:[%s376 + $0x48] sm:$0xff]
    %v387 = vld [vmem:[%s376 + $0x50] sm:$0xff]
    %v388 = vld [vmem:[%s376 + $0x58] sm:$0xff]
    %v389 = vld [vmem:[%s376 + $0x60] sm:$0xff]
    %v390 = vld [vmem:[%s376 + $0x68] sm:$0xff]
    %v391 = vld [vmem:[%s376 + $0x70] sm:$0xff]
    %v392 = vld [vmem:[%s376 + $0x78] sm:$0xff]
    %s393 = scalar_lea.vmem %s6, 2
    %v394 = vld [vmem:[%s393] sm:$0x1]
    %v396 = vlaneseq
    %v397 = vshrl.u32 %v396, 7
    %v398 = vsub.s32 0, %v397
    %v399 = vrot.slane %v394, %v398
    %401 = vmatprep.subr.mxu0 0.0
    %402 = vmatpush1.msra.mxu0 %v377
    %403 = vmatprep.subr.mxu0 0.0
    %404 = vmatpush1.msra.mxu0 %v378
    %405 = vmatprep.subr.mxu0 0.0
    %406 = vmatpush1.msra.mxu0 %v379
    %407 = vmatprep.subr.mxu0 0.0
    %408 = vmatpush1.msra.mxu0 %v380
    %409 = vmatprep.subr.mxu0 0.0
    %410 = vmatpush1.msra.mxu0 %v381
    %411 = vmatprep.subr.mxu0 0.0
    %412 = vmatpush1.msra.mxu0 %v382
    %413 = vmatprep.subr.mxu0 0.0
    %414 = vmatpush1.msra.mxu0 %v383
    %415 = vmatprep.subr.mxu0 0.0
    %416 = vmatpush1.msra.mxu0 %v384
    %417 = vmatprep.subr.mxu0 0.0
    %418 = vmatpush1.msra.mxu0 %v385
    %419 = vmatprep.subr.mxu0 0.0
    %420 = vmatpush1.msra.mxu0 %v386
    %421 = vmatprep.subr.mxu0 0.0
    %422 = vmatpush1.msra.mxu0 %v387
    %423 = vmatprep.subr.mxu0 0.0
    %424 = vmatpush1.msra.mxu0 %v388
    %425 = vmatprep.subr.mxu0 0.0
    %426 = vmatpush1.msra.mxu0 %v389
    %427 = vmatprep.subr.mxu0 0.0
    %428 = vmatpush1.msra.mxu0 %v390
    %429 = vmatprep.subr.mxu0 0.0
    %430 = vmatpush1.msra.mxu0 %v391
    %431 = vmatprep.subr.mxu0 0.0
    %432 = vmatpush1.msra.mxu0 %v392
    %433 = vmatprep.subr.mxu0 0.0
    %434 = vmatpush1.msra.mxu0 0.0
    %435 = vmatprep.subr.mxu0 0.0
    %436 = vmatpush1.msra.mxu0 0.0
    %437 = vmatprep.subr.mxu0 0.0
    %438 = vmatpush1.msra.mxu0 0.0
    %439 = vmatprep.subr.mxu0 0.0
    %440 = vmatpush1.msra.mxu0 0.0
    %441 = vmatprep.subr.mxu0 0.0
    %442 = vmatpush1.msra.mxu0 0.0
    %443 = vmatprep.subr.mxu0 0.0
    %444 = vmatpush1.msra.mxu0 0.0
    %445 = vmatprep.subr.mxu0 0.0
    %446 = vmatpush1.msra.mxu0 0.0
    %447 = vmatprep.subr.mxu0 0.0
    %448 = vmatpush1.msra.mxu0 0.0
    %449 = vmatprep.subr.mxu0 0.0
    %450 = vmatpush1.msra.mxu0 0.0
    %451 = vmatprep.subr.mxu0 0.0
    %452 = vmatpush1.msra.mxu0 0.0
    %453 = vmatprep.subr.mxu0 0.0
    %454 = vmatpush1.msra.mxu0 0.0
    %455 = vmatprep.subr.mxu0 0.0
    %456 = vmatpush1.msra.mxu0 0.0
    %457 = vmatprep.subr.mxu0 0.0
    %458 = vmatpush1.msra.mxu0 0.0
    %459 = vmatprep.subr.mxu0 0.0
    %460 = vmatpush1.msra.mxu0 0.0
    %461 = vmatprep.subr.mxu0 0.0
    %462 = vmatpush1.msra.mxu0 0.0
    %463 = vmatprep.subr.mxu0 0.0
    %464 = vmatpush1.msra.mxu0 0.0
    %465 = vmatprep.mubr.f32.mxu0 0.0
    %466 = vmatmul.mubr.f32.gmra.mrb[0].mxu0 %v372
    %v467 = vpop.f32.mrb[0].mxu0
    %v468 = vadd.f32 %v399, %v467
    %v469 = vpop.f32.mrb[0].mxu0
    %470 = vmatprep.mubr.f32.mxu0 0.0
    %471 = vmatmul.mubr.f32.gmra.mrb[0].mxu0 %v373
    %v472 = vpop.f32.mrb[0].mxu0
    %v473 = vadd.f32 %v399, %v472
    %v474 = vpop.f32.mrb[0].mxu0
    %475 = vmatprep.mubr.f32.mxu0 0.0
    %476 = vmatmul.mubr.f32.gmra.mrb[0].mxu0 %v374
    %v477 = vpop.f32.mrb[0].mxu0
    %v478 = vadd.f32 %v399, %v477
    %v479 = vpop.f32.mrb[0].mxu0
    %480 = vmatprep.mubr.f32.mxu0 0.0
    %481 = vmatmul.mubr.f32.gmra.mrb[0].mxu0 %v375
    %v482 = vpop.f32.mrb[0].mxu0
    %v483 = vadd.f32 %v399, %v482
    %v484 = vpop.f32.mrb[0].mxu0
    %485 = vdwg.mxu0
    %v486 = vtanh.pop %v468
    %v487 = vtanh.pop %v473
    %v488 = vtanh.pop %v478
    %v489 = vtanh.pop %v483
    %s490 = scalar_lea.vmem [#allocation2], 384
    %v491 = vld [vmem:[%s490] sm:$0xff]
    %v492 = vld [vmem:[%s490 + $0x8] sm:$0xff]
    %v493 = vld [vmem:[%s490 + $0x10] sm:$0xff]
    %v494 = vld [vmem:[%s490 + $0x18] sm:$0xff]
    %v495 = vld [vmem:[%s490 + $0x20] sm:$0xff]
    %v496 = vld [vmem:[%s490 + $0x28] sm:$0xff]
    %v497 = vld [vmem:[%s490 + $0x30] sm:$0xff]
    %v498 = vld [vmem:[%s490 + $0x38] sm:$0xff]
    %v499 = vld [vmem:[%s490 + $0x40] sm:$0xff]
    %v500 = vld [vmem:[%s490 + $0x48] sm:$0xff]
    %v501 = vld [vmem:[%s490 + $0x50] sm:$0xff]
    %v502 = vld [vmem:[%s490 + $0x58] sm:$0xff]
    %v503 = vld [vmem:[%s490 + $0x60] sm:$0xff]
    %v504 = vld [vmem:[%s490 + $0x68] sm:$0xff]
    %v505 = vld [vmem:[%s490 + $0x70] sm:$0xff]
    %v506 = vld [vmem:[%s490 + $0x78] sm:$0xff]
    %s507 = scalar_lea.vmem %s6, 3
    %v508 = vld [vmem:[%s507] sm:$0x1]
    %v510 = vlaneseq
    %v511 = vshrl.u32 %v510, 7
    %v512 = vsub.s32 0, %v511
    %v513 = vrot.slane %v508, %v512
    %515 = vmatprep.subr.mxu0 0.0
    %516 = vmatpush1.msra.mxu0 %v491
    %517 = vmatprep.subr.mxu0 0.0
    %518 = vmatpush1.msra.mxu0 %v492
    %519 = vmatprep.subr.mxu0 0.0
    %520 = vmatpush1.msra.mxu0 %v493
    %521 = vmatprep.subr.mxu0 0.0
    %522 = vmatpush1.msra.mxu0 %v494
    %523 = vmatprep.subr.mxu0 0.0
    %524 = vmatpush1.msra.mxu0 %v495
    %525 = vmatprep.subr.mxu0 0.0
    %526 = vmatpush1.msra.mxu0 %v496
    %527 = vmatprep.subr.mxu0 0.0
    %528 = vmatpush1.msra.mxu0 %v497
    %529 = vmatprep.subr.mxu0 0.0
    %530 = vmatpush1.msra.mxu0 %v498
    %531 = vmatprep.subr.mxu0 0.0
    %532 = vmatpush1.msra.mxu0 %v499
    %533 = vmatprep.subr.mxu0 0.0
    %534 = vmatpush1.msra.mxu0 %v500
    %535 = vmatprep.subr.mxu0 0.0
    %536 = vmatpush1.msra.mxu0 %v501
    %537 = vmatprep.subr.mxu0 0.0
    %538 = vmatpush1.msra.mxu0 %v502
    %539 = vmatprep.subr.mxu0 0.0
    %540 = vmatpush1.msra.mxu0 %v503
    %541 = vmatprep.subr.mxu0 0.0
    %542 = vmatpush1.msra.mxu0 %v504
    %543 = vmatprep.subr.mxu0 0.0
    %544 = vmatpush1.msra.mxu0 %v505
    %545 = vmatprep.subr.mxu0 0.0
    %546 = vmatpush1.msra.mxu0 %v506
    %547 = vmatprep.subr.mxu0 0.0
    %548 = vmatpush1.msra.mxu0 0.0
    %549 = vmatprep.subr.mxu0 0.0
    %550 = vmatpush1.msra.mxu0 0.0
    %551 = vmatprep.subr.mxu0 0.0
    %552 = vmatpush1.msra.mxu0 0.0
    %553 = vmatprep.subr.mxu0 0.0
    %554 = vmatpush1.msra.mxu0 0.0
    %555 = vmatprep.subr.mxu0 0.0
    %556 = vmatpush1.msra.mxu0 0.0
    %557 = vmatprep.subr.mxu0 0.0
    %558 = vmatpush1.msra.mxu0 0.0
    %559 = vmatprep.subr.mxu0 0.0
    %560 = vmatpush1.msra.mxu0 0.0
    %561 = vmatprep.subr.mxu0 0.0
    %562 = vmatpush1.msra.mxu0 0.0
    %563 = vmatprep.subr.mxu0 0.0
    %564 = vmatpush1.msra.mxu0 0.0
    %565 = vmatprep.subr.mxu0 0.0
    %566 = vmatpush1.msra.mxu0 0.0
    %567 = vmatprep.subr.mxu0 0.0
    %568 = vmatpush1.msra.mxu0 0.0
    %569 = vmatprep.subr.mxu0 0.0
    %570 = vmatpush1.msra.mxu0 0.0
    %571 = vmatprep.subr.mxu0 0.0
    %572 = vmatpush1.msra.mxu0 0.0
    %573 = vmatprep.subr.mxu0 0.0
    %574 = vmatpush1.msra.mxu0 0.0
    %575 = vmatprep.subr.mxu0 0.0
    %576 = vmatpush1.msra.mxu0 0.0
    %577 = vmatprep.subr.mxu0 0.0
    %578 = vmatpush1.msra.mxu0 0.0
    %579 = vmatprep.mubr.f32.mxu0 0.0
    %580 = vmatmul.mubr.f32.gmra.mrb[0].mxu0 %v486
    %v581 = vpop.f32.mrb[0].mxu0
    %v582 = vadd.f32 %v513, %v581
    %v583 = vpop.f32.mrb[0].mxu0
    %584 = vmatprep.mubr.f32.mxu0 0.0
    %585 = vmatmul.mubr.f32.gmra.mrb[0].mxu0 %v487
    %v586 = vpop.f32.mrb[0].mxu0
    %v587 = vadd.f32 %v513, %v586
    %v588 = vpop.f32.mrb[0].mxu0
    %589 = vmatprep.mubr.f32.mxu0 0.0
    %590 = vmatmul.mubr.f32.gmra.mrb[0].mxu0 %v488
    %v591 = vpop.f32.mrb[0].mxu0
    %v592 = vadd.f32 %v513, %v591
    %v593 = vpop.f32.mrb[0].mxu0
    %594 = vmatprep.mubr.f32.mxu0 0.0
    %595 = vmatmul.mubr.f32.gmra.mrb[0].mxu0 %v489
    %v596 = vpop.f32.mrb[0].mxu0
    %v597 = vadd.f32 %v513, %v596
    %v598 = vpop.f32.mrb[0].mxu0
    %599 = vdwg.mxu0
    %v600 = vtanh.pop %v582
    %v601 = vtanh.pop %v587
    %v602 = vtanh.pop %v592
    %v603 = vtanh.pop %v597
    %s604 = scalar_lea.vmem [#allocation2], 512
    %v605 = vld [vmem:[%s604] sm:$0xff]
    %v606 = vld [vmem:[%s604 + $0x8] sm:$0xff]
    %v607 = vld [vmem:[%s604 + $0x10] sm:$0xff]
    %v608 = vld [vmem:[%s604 + $0x18] sm:$0xff]
    %v609 = vld [vmem:[%s604 + $0x20] sm:$0xff]
    %v610 = vld [vmem:[%s604 + $0x28] sm:$0xff]
    %v611 = vld [vmem:[%s604 + $0x30] sm:$0xff]
    %v612 = vld [vmem:[%s604 + $0x38] sm:$0xff]
    %v613 = vld [vmem:[%s604 + $0x40] sm:$0xff]
    %v614 = vld [vmem:[%s604 + $0x48] sm:$0xff]
    %v615 = vld [vmem:[%s604 + $0x50] sm:$0xff]
    %v616 = vld [vmem:[%s604 + $0x58] sm:$0xff]
    %v617 = vld [vmem:[%s604 + $0x60] sm:$0xff]
    %v618 = vld [vmem:[%s604 + $0x68] sm:$0xff]
    %v619 = vld [vmem:[%s604 + $0x70] sm:$0xff]
    %v620 = vld [vmem:[%s604 + $0x78] sm:$0xff]
    %s621 = scalar_lea.vmem %s6, 4
    %v622 = vld [vmem:[%s621] sm:$0x1]
    %v624 = vlaneseq
    %v625 = vshrl.u32 %v624, 7
    %v626 = vsub.s32 0, %v625
    %v627 = vrot.slane %v622, %v626
    %629 = vmatprep.subr.mxu0 0.0
    %630 = vmatpush1.msra.mxu0 %v605
    %631 = vmatprep.subr.mxu0 0.0
    %632 = vmatpush1.msra.mxu0 %v606
    %633 = vmatprep.subr.mxu0 0.0
    %634 = vmatpush1.msra.mxu0 %v607
    %635 = vmatprep.subr.mxu0 0.0
    %636 = vmatpush1.msra.mxu0 %v608
    %637 = vmatprep.subr.mxu0 0.0
    %638 = vmatpush1.msra.mxu0 %v609
    %639 = vmatprep.subr.mxu0 0.0
    %640 = vmatpush1.msra.mxu0 %v610
    %641 = vmatprep.subr.mxu0 0.0
    %642 = vmatpush1.msra.mxu0 %v611
    %643 = vmatprep.subr.mxu0 0.0
    %644 = vmatpush1.msra.mxu0 %v612
    %645 = vmatprep.subr.mxu0 0.0
    %646 = vmatpush1.msra.mxu0 %v613
    %647 = vmatprep.subr.mxu0 0.0
    %648 = vmatpush1.msra.mxu0 %v614
    %649 = vmatprep.subr.mxu0 0.0
    %650 = vmatpush1.msra.mxu0 %v615
    %651 = vmatprep.subr.mxu0 0.0
    %652 = vmatpush1.msra.mxu0 %v616
    %653 = vmatprep.subr.mxu0 0.0
    %654 = vmatpush1.msra.mxu0 %v617
    %655 = vmatprep.subr.mxu0 0.0
    %656 = vmatpush1.msra.mxu0 %v618
    %657 = vmatprep.subr.mxu0 0.0
    %658 = vmatpush1.msra.mxu0 %v619
    %659 = vmatprep.subr.mxu0 0.0
    %660 = vmatpush1.msra.mxu0 %v620
    %661 = vmatprep.subr.mxu0 0.0
    %662 = vmatpush1.msra.mxu0 0.0
    %663 = vmatprep.subr.mxu0 0.0
    %664 = vmatpush1.msra.mxu0 0.0
    %665 = vmatprep.subr.mxu0 0.0
    %666 = vmatpush1.msra.mxu0 0.0
    %667 = vmatprep.subr.mxu0 0.0
    %668 = vmatpush1.msra.mxu0 0.0
    %669 = vmatprep.subr.mxu0 0.0
    %670 = vmatpush1.msra.mxu0 0.0
    %671 = vmatprep.subr.mxu0 0.0
    %672 = vmatpush1.msra.mxu0 0.0
    %673 = vmatprep.subr.mxu0 0.0
    %674 = vmatpush1.msra.mxu0 0.0
    %675 = vmatprep.subr.mxu0 0.0
    %676 = vmatpush1.msra.mxu0 0.0
    %677 = vmatprep.subr.mxu0 0.0
    %678 = vmatpush1.msra.mxu0 0.0
    %679 = vmatprep.subr.mxu0 0.0
    %680 = vmatpush1.msra.mxu0 0.0
    %681 = vmatprep.subr.mxu0 0.0
    %682 = vmatpush1.msra.mxu0 0.0
    %683 = vmatprep.subr.mxu0 0.0
    %684 = vmatpush1.msra.mxu0 0.0
    %685 = vmatprep.subr.mxu0 0.0
    %686 = vmatpush1.msra.mxu0 0.0
    %687 = vmatprep.subr.mxu0 0.0
    %688 = vmatpush1.msra.mxu0 0.0
    %689 = vmatprep.subr.mxu0 0.0
    %690 = vmatpush1.msra.mxu0 0.0
    %691 = vmatprep.subr.mxu0 0.0
    %692 = vmatpush1.msra.mxu0 0.0
    %693 = vmatprep.mubr.f32.mxu0 0.0
    %694 = vmatmul.mubr.f32.gmra.mrb[0].mxu0 %v600
    %v695 = vpop.f32.mrb[0].mxu0
    %v696 = vadd.f32 %v627, %v695
    %v697 = vpop.f32.mrb[0].mxu0
    %698 = vmatprep.mubr.f32.mxu0 0.0
    %699 = vmatmul.mubr.f32.gmra.mrb[0].mxu0 %v601
    %v700 = vpop.f32.mrb[0].mxu0
    %v701 = vadd.f32 %v627, %v700
    %v702 = vpop.f32.mrb[0].mxu0
    %703 = vmatprep.mubr.f32.mxu0 0.0
    %704 = vmatmul.mubr.f32.gmra.mrb[0].mxu0 %v602
    %v705 = vpop.f32.mrb[0].mxu0
    %v706 = vadd.f32 %v627, %v705
    %v707 = vpop.f32.mrb[0].mxu0
    %708 = vmatprep.mubr.f32.mxu0 0.0
    %709 = vmatmul.mubr.f32.gmra.mrb[0].mxu0 %v603
    %v710 = vpop.f32.mrb[0].mxu0
    %v711 = vadd.f32 %v627, %v710
    %v712 = vpop.f32.mrb[0].mxu0
    %713 = vdwg.mxu0
    %v714 = vtanh.pop %v696
    %v715 = vtanh.pop %v701
    %v716 = vtanh.pop %v706
    %v717 = vtanh.pop %v711
    %v718 = vld [vmem:[#allocation5] sm:$0xff]
    %v719 = vld [vmem:[#allocation5 + $0x8] sm:$0xff]
    %v720 = vld [vmem:[#allocation5 + $0x10] sm:$0xff]
    %v721 = vld [vmem:[#allocation5 + $0x18] sm:$0xff]
    %v722 = vld [vmem:[#allocation5 + $0x20] sm:$0xff]
    %v723 = vld [vmem:[#allocation5 + $0x28] sm:$0xff]
    %v724 = vld [vmem:[#allocation5 + $0x30] sm:$0xff]
    %v725 = vld [vmem:[#allocation5 + $0x38] sm:$0xff]
    %v726 = vld [vmem:[#allocation5 + $0x40] sm:$0xff]
    %v727 = vld [vmem:[#allocation5 + $0x48] sm:$0xff]
    %v728 = vld [vmem:[#allocation5 + $0x50] sm:$0xff]
    %v729 = vld [vmem:[#allocation5 + $0x58] sm:$0xff]
    %v730 = vld [vmem:[#allocation5 + $0x60] sm:$0xff]
    %v731 = vld [vmem:[#allocation5 + $0x68] sm:$0xff]
    %v732 = vld [vmem:[#allocation5 + $0x70] sm:$0xff]
    %v733 = vld [vmem:[#allocation5 + $0x78] sm:$0xff]
    %v734 = vld [vmem:[%s8] sm:$0x1]
    %v736 = vlaneseq
    %v737 = vshrl.u32 %v736, 7
    %v738 = vsub.s32 0, %v737
    %v739 = vrot.slane %v734, %v738
    %741 = vmatprep.subr.mxu0 0.0
    %742 = vmatpush1.msra.mxu0 %v718
    %743 = vmatprep.subr.mxu0 0.0
    %744 = vmatpush1.msra.mxu0 %v719
    %745 = vmatprep.subr.mxu0 0.0
    %746 = vmatpush1.msra.mxu0 %v720
    %747 = vmatprep.subr.mxu0 0.0
    %748 = vmatpush1.msra.mxu0 %v721
    %749 = vmatprep.subr.mxu0 0.0
    %750 = vmatpush1.msra.mxu0 %v722
    %751 = vmatprep.subr.mxu0 0.0
    %752 = vmatpush1.msra.mxu0 %v723
    %753 = vmatprep.subr.mxu0 0.0
    %754 = vmatpush1.msra.mxu0 %v724
    %755 = vmatprep.subr.mxu0 0.0
    %756 = vmatpush1.msra.mxu0 %v725
    %757 = vmatprep.subr.mxu0 0.0
    %758 = vmatpush1.msra.mxu0 %v726
    %759 = vmatprep.subr.mxu0 0.0
    %760 = vmatpush1.msra.mxu0 %v727
    %761 = vmatprep.subr.mxu0 0.0
    %762 = vmatpush1.msra.mxu0 %v728
    %763 = vmatprep.subr.mxu0 0.0
    %764 = vmatpush1.msra.mxu0 %v729
    %765 = vmatprep.subr.mxu0 0.0
    %766 = vmatpush1.msra.mxu0 %v730
    %767 = vmatprep.subr.mxu0 0.0
    %768 = vmatpush1.msra.mxu0 %v731
    %769 = vmatprep.subr.mxu0 0.0
    %770 = vmatpush1.msra.mxu0 %v732
    %771 = vmatprep.subr.mxu0 0.0
    %772 = vmatpush1.msra.mxu0 %v733
    %773 = vmatprep.subr.mxu0 0.0
    %774 = vmatpush1.msra.mxu0 0.0
    %775 = vmatprep.subr.mxu0 0.0
    %776 = vmatpush1.msra.mxu0 0.0
    %777 = vmatprep.subr.mxu0 0.0
    %778 = vmatpush1.msra.mxu0 0.0
    %779 = vmatprep.subr.mxu0 0.0
    %780 = vmatpush1.msra.mxu0 0.0
    %781 = vmatprep.subr.mxu0 0.0
    %782 = vmatpush1.msra.mxu0 0.0
    %783 = vmatprep.subr.mxu0 0.0
    %784 = vmatpush1.msra.mxu0 0.0
    %785 = vmatprep.subr.mxu0 0.0
    %786 = vmatpush1.msra.mxu0 0.0
    %787 = vmatprep.subr.mxu0 0.0
    %788 = vmatpush1.msra.mxu0 0.0
    %789 = vmatprep.subr.mxu0 0.0
    %790 = vmatpush1.msra.mxu0 0.0
    %791 = vmatprep.subr.mxu0 0.0
    %792 = vmatpush1.msra.mxu0 0.0
    %793 = vmatprep.subr.mxu0 0.0
    %794 = vmatpush1.msra.mxu0 0.0
    %795 = vmatprep.subr.mxu0 0.0
    %796 = vmatpush1.msra.mxu0 0.0
    %797 = vmatprep.subr.mxu0 0.0
    %798 = vmatpush1.msra.mxu0 0.0
    %799 = vmatprep.subr.mxu0 0.0
    %800 = vmatpush1.msra.mxu0 0.0
    %801 = vmatprep.subr.mxu0 0.0
    %802 = vmatpush1.msra.mxu0 0.0
    %803 = vmatprep.subr.mxu0 0.0
    %804 = vmatpush1.msra.mxu0 0.0
    %805 = vmatprep.mubr.f32.mxu0 0.0
    %806 = vmatmul.mubr.f32.gmra.mrb[0].mxu0 %v714
    %v807 = vpop.f32.mrb[0].mxu0
    %v808 = vadd.f32 %v739, %v807
    %v809 = vpop.f32.mrb[0].mxu0
    %810 = vmatprep.mubr.f32.mxu0 0.0
    %811 = vmatmul.mubr.f32.gmra.mrb[0].mxu0 %v715
    %v812 = vpop.f32.mrb[0].mxu0
    %v813 = vadd.f32 %v739, %v812
    %v814 = vpop.f32.mrb[0].mxu0
    %815 = vmatprep.mubr.f32.mxu0 0.0
    %816 = vmatmul.mubr.f32.gmra.mrb[0].mxu0 %v716
    %v817 = vpop.f32.mrb[0].mxu0
    %v818 = vadd.f32 %v739, %v817
    %v819 = vpop.f32.mrb[0].mxu0
    %820 = vmatprep.mubr.f32.mxu0 0.0
    %821 = vmatmul.mubr.f32.gmra.mrb[0].mxu0 %v717
    %v822 = vpop.f32.mrb[0].mxu0
    %v823 = vadd.f32 %v739, %v822
    %v824 = vpop.f32.mrb[0].mxu0
    %825 = vdwg.mxu0
    %826 = vst [vmem:[#allocation7] sm:$0xff] %v808
    %827 = vst [vmem:[#allocation7 + $0x8] sm:$0xff] %v813
    %828 = vst [vmem:[#allocation7 + $0x10] sm:$0xff] %v818
    %829 = vst [vmem:[#allocation7 + $0x18] sm:$0xff] %v823
    // Predicated region
    $region46: #{tpu_custom_call.1} parent=1 // pred_check
      _
    $region47: #{tpu_custom_call.1} parent=1 // pred_check_branch
      %831 = sbr.rel (0) target = $region49
    $region48: #{tpu_custom_call.1} parent=1 // pred_region
      %s833 = ssub.s32 512, 512
      %834 = vsyncadd [#allocation4], %s833
      %s835 = sshll.u32 [#allocation7], 4
      %s836 = int_to_ptr.vmem [resolvable:$true] %s835
      %841 = dma.vmem_to_hbm [thread:$0]  %s836, 512, %s9, [#allocation4], 128, 128, 8
    $region49: #{tpu_custom_call.1} parent=1 // pred_fallthru
      _
    // Predicated region
    $region50: #{tpu_custom_call.1} parent=1 // pred_check
      _
    $region51: #{tpu_custom_call.1} parent=1 // pred_check_branch
      %843 = sbr.rel (0) target = $region53
    $region52: #{tpu_custom_call.1} parent=1 // pred_region
      %844 = dma.done [#allocation4], 512
    $region53: #{tpu_custom_call.1} parent=1 // pred_fallthru
      _
    %845 = vsyncpa [#allocation3], 1
    %846 = vsyncpa [#allocation6], 1
    %847 = vsyncpa [#allocation4], 1

</llo_original>
